<compile_context>
chip_gen: v6e
topology: v6e:2x2x1
jax: 0.10.0
libtpu: 0.0.40
codegen_flags: <defaults>
</compile_context>

<pallas_src>
import math

import jax
import jax.numpy as jnp
import numpy as np
from jax.experimental import pallas as pl
from jax.experimental.pallas import tpu as pltpu


def _gcn_kernel(x_ref, att_ref, w_ref, bias_ref, o_ref):
    # x_ref:    (bb, N_pad, C_in*T)    VMEM
    # att_ref:  (N_pad, N_pad)         VMEM (zero padded adjacency)
    # w_ref:    (C_in*T, C_out*T)      VMEM (kron(Wc, Ws))
    # bias_ref: (1, C_out*T)           VMEM (bias tiled over C_out)
    # o_ref:    (bb, N_pad, C_out*T)   VMEM
    bb, n_pad, ct = x_ref.shape
    ot = o_ref.shape[2]

    # Stage 1: fused channel+time mix; batch folded into the M dimension.
    #   sw[(b,n), (o,s)] = sum_{c,t} x[b,c,n,t] * Wc[c,o] * Ws[t,s]
    x2 = x_ref[...].reshape(bb * n_pad, ct)          # free: n_pad % 8 == 0
    sw = jnp.dot(x2, w_ref[...], preferred_element_type=jnp.float32)

    # Stage 2: node mix with the shared adjacency (one matmul per batch elem).
    att = att_ref[...]
    bias = jnp.broadcast_to(bias_ref[...], (n_pad, ot))   # hoisted broadcast
    for b in range(bb):
        y = jnp.dot(att, sw[b * n_pad:(b + 1) * n_pad, :],
                    preferred_element_type=jnp.float32)
        o_ref[b] = (y + bias).astype(o_ref.dtype)


def graph_convolution(x, att, weight_c, weight_seq, bias):
    """x: (B, C_in, node_n, seq_len) -> (B, C_out, node_n, seq_len)."""
    B, C_in, N, T = x.shape
    C_out = weight_c.shape[1]

    n_pad = ((N + 7) // 8) * 8        # 22 -> 24 (sublane aligned)
    ct = C_in * T                     # fused (c, t) contraction axis
    ot = C_out * T                    # fused (o, s) output axis

    # Two parallel grid steps (one per v7x TensorCore); otherwise collapsed.
    G = 2 if B >= 2 else 1
    bb = (B + G - 1) // G
    b_pad = G * bb

    # ---- wrapper-side layout plumbing (tiny arrays; pure data movement) ----
    # x[b,c,n,t] -> xw[b, n, c*T + t], node axis zero padded to n_pad.
    xw = jnp.transpose(x, (0, 2, 1, 3)).reshape(B, N, ct)
    xw = jnp.pad(xw, ((0, b_pad - B), (0, n_pad - N), (0, 0)))
    att_p = jnp.pad(att, ((0, n_pad - N), (0, n_pad - N)))
    # Precomputable weight transform: W_big[(c,t),(o,s)] = Wc[c,o] * Ws[t,s].
    w_big = jnp.kron(weight_c, weight_seq)           # (C_in*T, C_out*T)
    bias2d = jnp.tile(bias, C_out).reshape(1, ot)    # bias_big[(o,s)] = bias[s]

    out_p = pl.pallas_call(
        _gcn_kernel,
        out_shape=jax.ShapeDtypeStruct((b_pad, n_pad, ot), x.dtype),
        grid=(G,),
        in_specs=[
            pl.BlockSpec((bb, n_pad, ct), lambda i: (i, 0, 0)),
            pl.BlockSpec((n_pad, n_pad), lambda i: (0, 0)),
            pl.BlockSpec((ct, ot), lambda i: (0, 0)),
            pl.BlockSpec((1, ot), lambda i: (0, 0)),
        ],
        out_specs=pl.BlockSpec((bb, n_pad, ot), lambda i: (i, 0, 0)),
        compiler_params=pltpu.CompilerParams(
            dimension_semantics=("parallel",)),
    )(xw, att_p, w_big, bias2d)

    # (b_pad, n_pad, C_out*T) -> (B, C_out, N, T)  (the module's output layout)
    out = out_p[:B, :N, :].reshape(B, N, C_out, T)
    return jnp.transpose(out, (0, 2, 1, 3))


if __name__ == "__main__":
    # Shapes consistent with the module defaults (node_n=22, seq_len=35).
    B, C_in, C_out, node_n, seq_len = 2, 4, 8, 22, 35

    key = jax.random.PRNGKey(0)
    kx, ka, kc, ks, kb = jax.random.split(key, 5)
    stdv = 1.0 / math.sqrt(node_n)  # matches reset_parameters()

    x = jax.random.normal(kx, (B, C_in, node_n, seq_len), dtype=jnp.float32)
    att = jax.random.uniform(ka, (node_n, node_n), jnp.float32, -stdv, stdv)
    weight_c = jax.random.uniform(kc, (C_in, C_out), jnp.float32, -stdv, stdv)
    weight_seq = jax.random.uniform(ks, (seq_len, seq_len), jnp.float32, -stdv, stdv)
    bias = jax.random.uniform(kb, (seq_len,), jnp.float32, -stdv, stdv)

    out = jax.block_until_ready(
        graph_convolution(x, att, weight_c, weight_seq, bias))

    # Plain-JAX reference of the exact PyTorch forward (same permutes).
    support = jnp.einsum('nm,bcmt->btnc', att, x)            # att @ x.permute(0,3,2,1)
    output_gcn = jnp.einsum('btnc,co->btno', support, weight_c)
    output_fc = jnp.einsum('btno,ts->bons', output_gcn, weight_seq)  # permute + @Ws + permute
    ref = output_fc + bias[None, None, None, :]

    assert out.shape == (B, C_out, node_n, seq_len)
    assert out.dtype == jnp.float32
    np.testing.assert_allclose(np.asarray(out), np.asarray(ref),
                               rtol=1e-4, atol=1e-4)
    print("KERNEL_OK")
</pallas_src>

<mosaic_0001>
module attributes {stable_mosaic.version = 11 : i64} {
  func.func @_gcn_kernel(%arg0: i32, %arg1: memref<1x24x140xf32, #tpu.memory_space<vmem>>, %arg2: memref<24x24xf32, #tpu.memory_space<vmem>>, %arg3: memref<140x280xf32, #tpu.memory_space<vmem>>, %arg4: memref<1x280xf32, #tpu.memory_space<vmem>>, %arg5: memref<1x24x280xf32, #tpu.memory_space<vmem>>) attributes {dimension_semantics = [#tpu.dimension_semantics<parallel>], iteration_bounds = array<i64: 2>, scalar_prefetch = 0 : i64, scratch_operands = 0 : i64, tpu.core_type = #tpu.core_type<tc>, window_params = [{transform_indices = @transform_0, window_bounds = array<i64: 1, 24, 140>}, {pipeline_mode = #tpu.pipeline_mode<synchronous>, transform_indices = @transform_1, window_bounds = array<i64: 24, 24>}, {pipeline_mode = #tpu.pipeline_mode<synchronous>, transform_indices = @transform_2, window_bounds = array<i64: 140, 280>}, {pipeline_mode = #tpu.pipeline_mode<synchronous>, transform_indices = @transform_3, window_bounds = array<i64: 1, 280>}, {transform_indices = @transform_4, window_bounds = array<i64: 1, 24, 280>}]} {
    %c0 = arith.constant 0 : index
    %c0_0 = arith.constant 0 : index
    %c0_1 = arith.constant 0 : index
    %0 = vector.load %arg1[%c0, %c0_0, %c0_1] : memref<1x24x140xf32, #tpu.memory_space<vmem>>, vector<1x24x140xf32>
    %1 = vector.shape_cast %0 : vector<1x24x140xf32> to vector<24x140xf32>
    %c0_2 = arith.constant 0 : index
    %c0_3 = arith.constant 0 : index
    %2 = vector.load %arg3[%c0_2, %c0_3] : memref<140x280xf32, #tpu.memory_space<vmem>>, vector<140x280xf32>
    %cst = arith.constant dense<0.000000e+00> : vector<24x280xf32>
    %3 = tpu.matmul %1, %2, %cst {dimension_numbers = #tpu.dot_dimension_numbers<[1], [0], [0], [1], [0, 0, 1, 1], [], []>} : vector<24x140xf32>, vector<140x280xf32>, vector<24x280xf32> -> vector<24x280xf32>
    %c0_4 = arith.constant 0 : index
    %c0_5 = arith.constant 0 : index
    %4 = vector.load %arg2[%c0_4, %c0_5] : memref<24x24xf32, #tpu.memory_space<vmem>>, vector<24x24xf32>
    %c0_6 = arith.constant 0 : index
    %c0_7 = arith.constant 0 : index
    %5 = vector.load %arg4[%c0_6, %c0_7] : memref<1x280xf32, #tpu.memory_space<vmem>>, vector<1x280xf32>
    %6 = vector.shape_cast %5 : vector<1x280xf32> to vector<1x280xf32>
    %7 = vector.broadcast %6 : vector<1x280xf32> to vector<24x280xf32>
    %cst_8 = arith.constant dense<0.000000e+00> : vector<24x280xf32>
    %8 = tpu.matmul %4, %3, %cst_8 {dimension_numbers = #tpu.dot_dimension_numbers<[1], [0], [0], [1], [0, 0, 1, 1], [], []>} : vector<24x24xf32>, vector<24x280xf32>, vector<24x280xf32> -> vector<24x280xf32>
    %9 = arith.addf %8, %7 : vector<24x280xf32>
    %c0_9 = arith.constant 0 : index
    %c0_10 = arith.constant 0 : index
    %c0_11 = arith.constant 0 : index
    %10 = vector.load %arg5[%c0_9, %c0_10, %c0_11] : memref<1x24x280xf32, #tpu.memory_space<vmem>>, vector<1x24x280xf32>
    %11 = vector.shape_cast %10 : vector<1x24x280xf32> to vector<24x280xf32>
    %12 = vector.shape_cast %9 : vector<24x280xf32> to vector<1x24x280xf32>
    tpu.vector_store %arg5[%c0_9, %c0_10, %c0_11], %12 {strides = array<i32>} : memref<1x24x280xf32, #tpu.memory_space<vmem>>, vector<1x24x280xf32>,
    return
  }
  func.func @transform_0(%arg0: i32) -> (i32, i32, i32) {
    %c0_i32 = arith.constant 0 : i32
    %c0_i32_0 = arith.constant 0 : i32
    %c0_i32_1 = arith.constant 0 : i32
    return %arg0, %c0_i32, %c0_i32_0 : i32, i32, i32
  }
  func.func @transform_1(%arg0: i32) -> (i32, i32) {
    %c0_i32 = arith.constant 0 : i32
    %c0_i32_0 = arith.constant 0 : i32
    %c0_i32_1 = arith.constant 0 : i32
    return %c0_i32, %c0_i32_0 : i32, i32
  }
  func.func @transform_2(%arg0: i32) -> (i32, i32) {
    %c0_i32 = arith.constant 0 : i32
    %c0_i32_0 = arith.constant 0 : i32
    %c0_i32_1 = arith.constant 0 : i32
    return %c0_i32, %c0_i32_0 : i32, i32
  }
  func.func @transform_3(%arg0: i32) -> (i32, i32) {
    %c0_i32 = arith.constant 0 : i32
    %c0_i32_0 = arith.constant 0 : i32
    %c0_i32_1 = arith.constant 0 : i32
    return %c0_i32, %c0_i32_0 : i32, i32
  }
  func.func @transform_4(%arg0: i32) -> (i32, i32, i32) {
    %c0_i32 = arith.constant 0 : i32
    %c0_i32_0 = arith.constant 0 : i32
    %c0_i32_1 = arith.constant 0 : i32
    return %arg0, %c0_i32, %c0_i32_0 : i32, i32, i32
  }
}

</mosaic_0001>

<llo_original>
// kernel: tpu_custom_call.1
$region0: #{tpu_custom_call.1}
  #allocation0 [shape = 'u32[]', space=smem, size = 0x4, offset = 0x4, fixed_abs, tag = 'smem constant byte address 0x4 - core index']
  #allocation1 [shape = 'u32[144,128]{1,0:T(1,128)}', space=vmem, size = 0x12000, scoped, tag = 'internal scratch']
  %s0 = inlined_call_operand.hbm [shape: f32[2,24,140], index: 0, kind: input, shape index: {}]
  %s1 = inlined_call_operand.hbm [shape: f32[24,24], index: 1, kind: input, shape index: {}]
  %s2 = inlined_call_operand.hbm [shape: f32[140,280], index: 2, kind: input, shape index: {}]
  %s3 = inlined_call_operand.vmem [shape: f32[1,280], index: 3, kind: input, shape index: {}]
  %s4 = inlined_call_operand.hbm [shape: f32[2,24,280], index: 4, kind: output, shape index: {}]
  %s5 = sld [smem:[#allocation0]]
  $region61: #{tpu_custom_call.1} parent=0
    _
  %s7 = ssub.s32 1, %s5
  %s8 = scalar_select 0, %s7, %s5
  $region1: #{tpu_custom_call.1} parent=0
    #allocation2 [shape = 'u8[49152]{0}', space=vmem, size = 0xc000, scoped, tag = 'input window, operand 0']
    #allocation3 [shape = 's32[2]{0}', space=sflag, size = 0x8, scoped, tag = 'scoped memory for tpu_custom_call.1']
    #allocation4 [shape = 's32[2]{0}', space=sflag, size = 0x8, scoped, tag = 'scoped memory for tpu_custom_call.1']
    #allocation5 [shape = 'u8[12288]{0}', space=vmem, size = 0x3000, scoped, tag = 'input window, operand 1, single buffered']
    #allocation6 [shape = 's32[1]{0}', space=sflag, size = 0x4, scoped, tag = 'scoped memory for tpu_custom_call.1']
    #allocation7 [shape = 'u8[221184]{0}', space=vmem, size = 0x36000, scoped, tag = 'input window, operand 2, single buffered']
    #allocation8 [shape = 'u8[73728]{0}', space=vmem, size = 0x12000, scoped, tag = 'output window, operand 0']
    %9 = vsyncpa [#allocation3], 0
    %s10 = scalar_lea.sflag [#allocation3], 1
    %11 = vsyncpa %s10, 0
    %12 = vsyncpa [#allocation6], 0
    %13 = vsyncpa [#allocation4], 0
    %s14 = scalar_lea.sflag [#allocation4], 1
    %15 = vsyncpa %s14, 0
    loop: start=0, step=1, limit=4
    $region2: #{tpu_custom_call.1} parent=1 // loop_pre_header
      _
    $region3: #{tpu_custom_call.1} parent=1 // loop_header
      %s17 = sphi 0, %s21
      %p18 = scmp.ge.s32.totalorder %s17, 4
      %s27 = sphi 0, %s29
      %s30 = sphi 0, %s27
      %s31 = sphi 0, %s30
      %s47 = sphi 0, %s31
      %s51 = sphi 0, %s51
      %s53 = sphi 0, %s51
      %s54 = sphi 0, %s53
      %s68 = sphi 0, %s54
      %s72 = sphi 0, %s72
      %s74 = sphi 0, %s72
      %s75 = sphi 0, %s74
      %s89 = sphi 0, %s75
      %s93 = sphi 0, %s93
      %s95 = sphi 0, %s93
      %s96 = sphi 0, %s95
      %s110 = sphi 0, %s96
      %s116 = sphi 0, %s118
      %s119 = sphi 0, %s116
      %s120 = sphi 0, %s119
      %s136 = sphi 0, %s120
    $region4: #{tpu_custom_call.1} parent=1 // loop_header_branch
      %20 = sbr.rel (%p18) target = $region8
    $region5: #{tpu_custom_call.1} parent=1 // loop_body
      %s22 = ssub.s32 %s17, 1
      %s23 = ssub.s32 %s17, 2
      %s24 = sadd.s32 %s17, 1
      %s25 = ssub.s32 %s17, %s24
      %p26 = scmp.eq.s32.totalorder %s25, 0
      %s28 = sadd.s32 %s27, 1
      %s29 = scalar_select %p26, %s27, %s28
      %p32 = pneg %p26
      %p33 = scmp.eq.s32.totalorder %s17, 1
      %p34 = por %p32, %p33
      %p35 = scmp.ne.s32.totalorder %s27, %s30
      %p36 = scmp.eq.s32.totalorder %s17, 0
      %p37 = por %p35, %p36
      %p38 = scmp.ne.s32.totalorder %s27, %s30
      %p39 = scmp.eq.s32.totalorder %s22, 1
      %p40 = por %p38, %p39
      %p41 = scmp.ne.s32.totalorder %s30, %s31
      %p42 = scmp.eq.s32.totalorder %s22, 0
      %p43 = por %p41, %p42
      %p44 = scmp.ne.s32.totalorder %s30, %s31
      %p45 = scmp.eq.s32.totalorder %s23, 1
      %p46 = por %p44, %p45
      %p48 = scmp.ne.s32.totalorder %s31, %s47
      %p49 = scmp.eq.s32.totalorder %s23, 0
      %p50 = por %p48, %p49
      %s52 = sadd.s32 %s51, 1
      %p55 = scmp.eq.s32.totalorder %s17, 1
      %p56 = scmp.ne.s32.totalorder %s51, %s53
      %p57 = scmp.eq.s32.totalorder %s17, 0
      %p58 = por %p56, %p57
      %p59 = scmp.ne.s32.totalorder %s51, %s53
      %p60 = scmp.eq.s32.totalorder %s22, 1
      %p61 = por %p59, %p60
      %p62 = scmp.ne.s32.totalorder %s53, %s54
      %p63 = scmp.eq.s32.totalorder %s22, 0
      %p64 = por %p62, %p63
      %p65 = scmp.ne.s32.totalorder %s53, %s54
      %p66 = scmp.eq.s32.totalorder %s23, 1
      %p67 = por %p65, %p66
      %p69 = scmp.ne.s32.totalorder %s54, %s68
      %p70 = scmp.eq.s32.totalorder %s23, 0
      %p71 = por %p69, %p70
      %s73 = sadd.s32 %s72, 1
      %p76 = scmp.eq.s32.totalorder %s17, 1
      %p77 = scmp.ne.s32.totalorder %s72, %s74
      %p78 = scmp.eq.s32.totalorder %s17, 0
      %p79 = por %p77, %p78
      %p80 = scmp.ne.s32.totalorder %s72, %s74
      %p81 = scmp.eq.s32.totalorder %s22, 1
      %p82 = por %p80, %p81
      %p83 = scmp.ne.s32.totalorder %s74, %s75
      %p84 = scmp.eq.s32.totalorder %s22, 0
      %p85 = por %p83, %p84
      %p86 = scmp.ne.s32.totalorder %s74, %s75
      %p87 = scmp.eq.s32.totalorder %s23, 1
      %p88 = por %p86, %p87
      %p90 = scmp.ne.s32.totalorder %s75, %s89
      %p91 = scmp.eq.s32.totalorder %s23, 0
      %p92 = por %p90, %p91
      %s94 = sadd.s32 %s93, 1
      %p97 = scmp.eq.s32.totalorder %s17, 1
      %p98 = scmp.ne.s32.totalorder %s93, %s95
      %p99 = scmp.eq.s32.totalorder %s17, 0
      %p100 = por %p98, %p99
      %p101 = scmp.ne.s32.totalorder %s93, %s95
      %p102 = scmp.eq.s32.totalorder %s22, 1
      %p103 = por %p101, %p102
      %p104 = scmp.ne.s32.totalorder %s95, %s96
      %p105 = scmp.eq.s32.totalorder %s22, 0
      %p106 = por %p104, %p105
      %p107 = scmp.ne.s32.totalorder %s95, %s96
      %p108 = scmp.eq.s32.totalorder %s23, 1
      %p109 = por %p107, %p108
      %p111 = scmp.ne.s32.totalorder %s96, %s110
      %p112 = scmp.eq.s32.totalorder %s23, 0
      %p113 = por %p111, %p112
      %s114 = ssub.s32 %s17, %s24
      %p115 = scmp.eq.s32.totalorder %s114, 0
      %s117 = sadd.s32 %s116, 1
      %s118 = scalar_select %p115, %s116, %s117
      %p121 = pneg %p115
      %p122 = scmp.eq.s32.totalorder %s17, 1
      %p123 = por %p121, %p122
      %p124 = scmp.ne.s32.totalorder %s116, %s119
      %p125 = scmp.eq.s32.totalorder %s17, 0
      %p126 = por %p124, %p125
      %p127 = scmp.ne.s32.totalorder %s116, %s119
      %p128 = scmp.eq.s32.totalorder %s22, 1
      %p129 = por %p127, %p128
      %p130 = scmp.ne.s32.totalorder %s119, %s120
      %p131 = scmp.eq.s32.totalorder %s22, 0
      %p132 = por %p130, %p131
      %p133 = scmp.ne.s32.totalorder %s119, %s120
      %p134 = scmp.eq.s32.totalorder %s23, 1
      %p135 = por %p133, %p134
      %p137 = scmp.ne.s32.totalorder %s120, %s136
      %p138 = scmp.eq.s32.totalorder %s23, 0
      %p139 = por %p137, %p138
      %p140 = scmp.le.s32.totalorder 1, %s17
      %p141 = scmp.lt.s32.totalorder %s17, 3
      %p142 = pnand %p140, %p141
      %p143 = pneg %p142
      // Predicated region
      $region9: #{tpu_custom_call.1} parent=5 // pred_check
        _
      $region10: #{tpu_custom_call.1} parent=5 // pred_check_branch
        %145 = sbr.rel (%p142) target = $region12
      $region11: #{tpu_custom_call.1} parent=5 // pred_region
        %s146 = ssub.s32 %s17, 1
        // Predicated region
        $region13: #{tpu_custom_call.1} parent=11 // pred_check
          %p147 = pneg %p64
        $region14: #{tpu_custom_call.1} parent=11 // pred_check_branch
          %149 = sbr.rel (%p147) target = $region16
        $region15: #{tpu_custom_call.1} parent=11 // pred_region
          %s151 = ssub.s32 384, 384
          %152 = vsyncadd [#allocation6], %s151
          %s153 = sshll.u32 [#allocation5], 4
          %s154 = int_to_ptr.vmem [resolvable:$true] %s153
          %159 = dma.hbm_to_vmem [thread:$0]  %s1, 384, %s154, [#allocation6], 128, 128, 8
        $region16: #{tpu_custom_call.1} parent=11 // pred_fallthru
          _
        // Predicated region
        $region17: #{tpu_custom_call.1} parent=11 // pred_check
          %p160 = pneg %p85
        $region18: #{tpu_custom_call.1} parent=11 // pred_check_branch
          %162 = sbr.rel (%p160) target = $region20
        $region19: #{tpu_custom_call.1} parent=11 // pred_region
          %s164 = ssub.s32 6912, 6912
          %165 = vsyncadd [#allocation6], %s164
          %s166 = sshll.u32 [#allocation7], 4
          %s167 = int_to_ptr.vmem [resolvable:$true] %s166
          %172 = dma.hbm_to_vmem [thread:$0]  %s2, 6912, %s167, [#allocation6], 384, 384, 24
        $region20: #{tpu_custom_call.1} parent=11 // pred_fallthru
          _
        // Predicated region
        $region21: #{tpu_custom_call.1} parent=11 // pred_check
          %p173 = pneg %p106
        $region22: #{tpu_custom_call.1} parent=11 // pred_check_branch
          %175 = sbr.rel (%p173) target = $region24
        $region23: #{tpu_custom_call.1} parent=11 // pred_region
          _
        $region24: #{tpu_custom_call.1} parent=11 // pred_fallthru
          _
      $region12: #{tpu_custom_call.1} parent=5 // pred_fallthru
        _
      %p176 = scmp.lt.s32.totalorder %s17, 2
      // Predicated region
      $region25: #{tpu_custom_call.1} parent=5 // pred_check
        %p177 = pneg %p176
      $region26: #{tpu_custom_call.1} parent=5 // pred_check_branch
        %179 = sbr.rel (%p177) target = $region28
      $region27: #{tpu_custom_call.1} parent=5 // pred_region
        // Predicated region
        $region29: #{tpu_custom_call.1} parent=27 // pred_check
          %p180 = pneg %p37
        $region30: #{tpu_custom_call.1} parent=27 // pred_check_branch
          %182 = sbr.rel (%p180) target = $region32
        $region31: #{tpu_custom_call.1} parent=27 // pred_region
          %s183 = sand.u32 %s27, 1
          %s184 = scalar_lea.sflag [#allocation3], %s183
          %s185 = sand.u32 %s27, 1
          %s186 = smul.addr %s185, 48
          %s187 = scalar_lea.vmem [#allocation2], %s186
          %s189 = ssub.s32 768, 768
          %190 = vsyncadd %s184, %s189
          %s191 = smul.addr %s17, 6
          %s192 = smul.addr %s191, 128
          %s193 = scalar_lea.hbm %s0, %s192
          %s194 = sshll.u32 %s187, 4
          %s195 = int_to_ptr.vmem [resolvable:$true] %s194
          %200 = dma.hbm_to_vmem [thread:$0]  %s193, 768, %s195, %s184, 256, 256, 16
        $region32: #{tpu_custom_call.1} parent=27 // pred_fallthru
          _
      $region28: #{tpu_custom_call.1} parent=5 // pred_fallthru
        _
      %p201 = scmp.le.s32.totalorder 1, %s17
      %p202 = scmp.lt.s32.totalorder %s17, 3
      %p203 = pnand %p201, %p202
      %p204 = pneg %p203
      // Predicated region
      $region33: #{tpu_custom_call.1} parent=5 // pred_check
        _
      $region34: #{tpu_custom_call.1} parent=5 // pred_check_branch
        %206 = sbr.rel (%p203) target = $region36
      $region35: #{tpu_custom_call.1} parent=5 // pred_region
        %s207 = ssub.s32 %s17, 1
        %s208 = sand.u32 %s30, 1
        %s209 = scalar_lea.sflag [#allocation3], %s208
        %s210 = sand.u32 %s30, 1
        %s211 = smul.addr %s210, 48
        %s212 = scalar_lea.vmem [#allocation2], %s211
        // Predicated region
        $region37: #{tpu_custom_call.1} parent=35 // pred_check
          %p213 = pneg %p43
        $region38: #{tpu_custom_call.1} parent=35 // pred_check_branch
          %215 = sbr.rel (%p213) target = $region40
        $region39: #{tpu_custom_call.1} parent=35 // pred_region
          %216 = dma.done %s209, 768
        $region40: #{tpu_custom_call.1} parent=35 // pred_fallthru
          _
        // Predicated region
        $region41: #{tpu_custom_call.1} parent=35 // pred_check
          %p217 = pneg %p64
        $region42: #{tpu_custom_call.1} parent=35 // pred_check_branch
          %219 = sbr.rel (%p217) target = $region44
        $region43: #{tpu_custom_call.1} parent=35 // pred_region
          %220 = dma.done [#allocation6], 384
        $region44: #{tpu_custom_call.1} parent=35 // pred_fallthru
          _
        // Predicated region
        $region45: #{tpu_custom_call.1} parent=35 // pred_check
          %p221 = pneg %p85
        $region46: #{tpu_custom_call.1} parent=35 // pred_check_branch
          %223 = sbr.rel (%p221) target = $region48
        $region47: #{tpu_custom_call.1} parent=35 // pred_region
          %224 = dma.done [#allocation6], 6912
        $region48: #{tpu_custom_call.1} parent=35 // pred_fallthru
          _
        %s225 = sand.u32 %s30, 1
        %s226 = scalar_lea.sflag [#allocation3], %s225
        %s227 = sand.u32 %s30, 1
        %s228 = smul.addr %s227, 48
        %s229 = scalar_lea.vmem [#allocation2], %s228
        %p230 = pneg %p43
        %p231 = pneg %p40
        %p232 = pneg %p64
        %p233 = pneg %p61
        %p234 = pneg %p85
        %p235 = pneg %p82
        %p236 = pneg %p106
        %p237 = pneg %p103
        %p238 = pneg %p132
        %p239 = pneg %p129
        %s240 = sand.u32 %s119, 1
        %s241 = scalar_lea.sflag [#allocation4], %s240
        %s242 = sand.u32 %s119, 1
        %s243 = smul.addr %s242, 72
        %s244 = scalar_lea.vmem [#allocation8], %s243
        %v245 = vld [vmem:[%s212] sm:$0xff]
        %v246 = vld [vmem:[%s212 + $0x8] sm:$0xff]
        %v247 = vld [vmem:[%s212 + $0x10] sm:$0xff]
        %v248 = vld [vmem:[%s212 + $0x18] sm:$0xff]
        %v249 = vld [vmem:[%s212 + $0x20] sm:$0xff]
        %v250 = vld [vmem:[%s212 + $0x28] sm:$0xff]
        %v251 = vld [vmem:[#allocation7] sm:$0xff]
        %v252 = vld [vmem:[#allocation7 + $0x8] sm:$0xff]
        %v253 = vld [vmem:[#allocation7 + $0x10] sm:$0xff]
        %v254 = vld [vmem:[#allocation7 + $0x18] sm:$0xff]
        %v255 = vld [vmem:[#allocation7 + $0x20] sm:$0xff]
        %v256 = vld [vmem:[#allocation7 + $0x28] sm:$0xff]
        %v257 = vld [vmem:[#allocation7 + $0x30] sm:$0xff]
        %v258 = vld [vmem:[#allocation7 + $0x38] sm:$0xff]
        %v259 = vld [vmem:[#allocation7 + $0x40] sm:$0xff]
        %v260 = vld [vmem:[#allocation7 + $0x48] sm:$0xff]
        %v261 = vld [vmem:[#allocation7 + $0x50] sm:$0xff]
        %v262 = vld [vmem:[#allocation7 + $0x58] sm:$0xff]
        %v263 = vld [vmem:[#allocation7 + $0x60] sm:$0xff]
        %v264 = vld [vmem:[#allocation7 + $0x68] sm:$0xff]
        %v265 = vld [vmem:[#allocation7 + $0x70] sm:$0xff]
        %v266 = vld [vmem:[#allocation7 + $0x78] sm:$0xff]
        %v267 = vld [vmem:[#allocation7 + $0x80] sm:$0xff]
        %v268 = vld [vmem:[#allocation7 + $0x88] sm:$0xff]
        %v269 = vld [vmem:[#allocation7 + $0x90] sm:$0xff]
        %v270 = vld [vmem:[#allocation7 + $0x98] sm:$0xff]
        %v271 = vld [vmem:[#allocation7 + $0xa0] sm:$0xff]
        %v272 = vld [vmem:[#allocation7 + $0xa8] sm:$0xff]
        %v273 = vld [vmem:[#allocation7 + $0xb0] sm:$0xff]
        %v274 = vld [vmem:[#allocation7 + $0xb8] sm:$0xff]
        %v275 = vld [vmem:[#allocation7 + $0xc0] sm:$0xff]
        %v276 = vld [vmem:[#allocation7 + $0xc8] sm:$0xff]
        %v277 = vld [vmem:[#allocation7 + $0xd0] sm:$0xff]
        %v278 = vld [vmem:[#allocation7 + $0xd8] sm:$0xff]
        %v279 = vld [vmem:[#allocation7 + $0xe0] sm:$0xff]
        %v280 = vld [vmem:[#allocation7 + $0xe8] sm:$0xff]
        %v281 = vld [vmem:[#allocation7 + $0xf0] sm:$0xff]
        %v282 = vld [vmem:[#allocation7 + $0xf8] sm:$0xff]
        %v283 = vld [vmem:[#allocation7 + $0x100] sm:$0xff]
        %v284 = vld [vmem:[#allocation7 + $0x108] sm:$0xff]
        %v285 = vld [vmem:[#allocation7 + $0x110] sm:$0xff]
        %v286 = vld [vmem:[#allocation7 + $0x118] sm:$0xff]
        %v287 = vld [vmem:[#allocation7 + $0x120] sm:$0xff]
        %v288 = vld [vmem:[#allocation7 + $0x128] sm:$0xff]
        %v289 = vld [vmem:[#allocation7 + $0x130] sm:$0xff]
        %v290 = vld [vmem:[#allocation7 + $0x138] sm:$0xff]
        %v291 = vld [vmem:[#allocation7 + $0x140] sm:$0xff]
        %v292 = vld [vmem:[#allocation7 + $0x148] sm:$0xff]
        %v293 = vld [vmem:[#allocation7 + $0x150] sm:$0xff]
        %v294 = vld [vmem:[#allocation7 + $0x158] sm:$0xff]
        %v295 = vld [vmem:[#allocation7 + $0x160] sm:$0xff]
        %v296 = vld [vmem:[#allocation7 + $0x168] sm:$0xff]
        %v297 = vld [vmem:[#allocation7 + $0x170] sm:$0xff]
        %v298 = vld [vmem:[#allocation7 + $0x178] sm:$0xff]
        %v299 = vld [vmem:[#allocation7 + $0x180] sm:$0xff]
        %v300 = vld [vmem:[#allocation7 + $0x188] sm:$0xff]
        %v301 = vld [vmem:[#allocation7 + $0x190] sm:$0xff]
        %v302 = vld [vmem:[#allocation7 + $0x198] sm:$0xf]
        %v303 = vld [vmem:[#allocation7 + $0x1a0] sm:$0xf]
        %v304 = vld [vmem:[#allocation7 + $0x1a8] sm:$0xf]
        %vm305 = vcmask 97280
        %v307 = vsel %vm305, %v246, 0
        %v310 = vsel %vm305, %v248, 0
        %v313 = vsel %vm305, %v250, 0
        %vm315 = vcmask 1043456
        %v317 = vsel %vm315, %v302, 0
        %v320 = vsel %vm315, %v303, 0
        %v323 = vsel %vm315, %v304, 0
        %325 = vmatprep.subr.mxu0 %v297
        %326 = vmatpush1.msra.mxu0 %v296
        %327 = vmatprep.subr.mxu0 %v294
        %328 = vmatpush1.msra.mxu0 %v293
        %329 = vmatprep.subr.mxu0 %v291
        %330 = vmatpush1.msra.mxu0 %v290
        %331 = vmatprep.subr.mxu0 %v288
        %332 = vmatpush1.msra.mxu0 %v287
        %333 = vmatprep.subr.mxu0 %v285
        %334 = vmatpush1.msra.mxu0 %v284
        %335 = vmatprep.subr.mxu0 %v282
        %336 = vmatpush1.msra.mxu0 %v281
        %337 = vmatprep.subr.mxu0 %v279
        %338 = vmatpush1.msra.mxu0 %v278
        %339 = vmatprep.subr.mxu0 %v276
        %340 = vmatpush1.msra.mxu0 %v275
        %341 = vmatprep.subr.mxu0 %v273
        %342 = vmatpush1.msra.mxu0 %v272
        %343 = vmatprep.subr.mxu0 %v270
        %344 = vmatpush1.msra.mxu0 %v269
        %345 = vmatprep.subr.mxu0 %v267
        %346 = vmatpush1.msra.mxu0 %v266
        %347 = vmatprep.subr.mxu0 %v264
        %348 = vmatpush1.msra.mxu0 %v263
        %349 = vmatprep.subr.mxu0 %v261
        %350 = vmatpush1.msra.mxu0 %v260
        %351 = vmatprep.subr.mxu0 %v258
        %352 = vmatpush1.msra.mxu0 %v257
        %353 = vmatprep.subr.mxu0 %v255
        %354 = vmatpush1.msra.mxu0 %v254
        %355 = vmatprep.subr.mxu0 %v252
        %356 = vmatpush1.msra.mxu0 %v251
        %357 = vmatprep.subr.mxu0 0.0
        %358 = vmatpush2.msra.mxu0 0.0
        %359 = vmatprep.subr.mxu0 0.0
        %360 = vmatpush2.msra.mxu0 0.0
        %361 = vmatprep.subr.mxu0 0.0
        %362 = vmatpush2.msra.mxu0 0.0
        %363 = vmatprep.subr.mxu0 0.0
        %364 = vmatpush2.msra.mxu0 0.0
        %365 = vmatprep.subr.mxu0 0.0
        %366 = vmatpush2.msra.mxu0 0.0
        %367 = vmatprep.subr.mxu0 0.0
        %368 = vmatpush2.msra.mxu0 0.0
        %369 = vmatprep.subr.mxu0 0.0
        %370 = vmatpush2.msra.mxu0 0.0
        %371 = vmatprep.subr.mxu0 0.0
        %372 = vmatpush2.msra.mxu0 0.0
        %373 = vmatprep.subr.mxu0 0.0
        %374 = vmatpush2.msra.mxu0 0.0
        %375 = vmatprep.subr.mxu0 0.0
        %376 = vmatpush2.msra.mxu0 0.0
        %377 = vmatprep.subr.mxu0 0.0
        %378 = vmatpush2.msra.mxu0 0.0
        %379 = vmatprep.subr.mxu0 0.0
        %380 = vmatpush2.msra.mxu0 0.0
        %381 = vmatprep.subr.mxu0 0.0
        %382 = vmatpush2.msra.mxu0 0.0
        %383 = vmatprep.subr.mxu0 0.0
        %384 = vmatpush2.msra.mxu0 0.0
        %385 = vmatprep.subr.mxu0 %v320
        %386 = vmatpush2.msra.mxu0 %v317
        %387 = vmatprep.subr.mxu0 %v300
        %388 = vmatpush2.msra.mxu0 %v299
        %389 = vmatprep.mubr.f32.mxu0 %v307
        %390 = vmatmul.mubr.f32.gmra.mxu0 %v245
        %v391 = vpop.f32.mrf.mxu0
        %v392 = vadd.f32 0.0, %v391
        %v393 = vpop.f32.mrf.mxu0
        %v394 = vadd.f32 0.0, %v393
        %395 = vmatprep.mubr.f32.mxu0 %v310
        %396 = vmatmul.mubr.f32.gmra.mxu0 %v247
        %v397 = vpop.f32.mrf.mxu0
        %v398 = vadd.f32 0.0, %v397
        %v399 = vpop.f32.mrf.mxu0
        %v400 = vadd.f32 0.0, %v399
        %401 = vmatprep.mubr.f32.mxu0 %v313
        %402 = vmatmul.mubr.f32.gmra.mxu0 %v249
        %v403 = vpop.f32.mrf.mxu0
        %v404 = vadd.f32 0.0, %v403
        %v405 = vpop.f32.mrf.mxu0
        %v406 = vadd.f32 0.0, %v405
        %407 = vdwg.mxu0
        %408 = vmatprep.subr.mxu0 0.0
        %409 = vmatpush1.msra.mxu0 %v298
        %410 = vmatprep.subr.mxu0 0.0
        %411 = vmatpush1.msra.mxu0 %v295
        %412 = vmatprep.subr.mxu0 0.0
        %413 = vmatpush1.msra.mxu0 %v292
        %414 = vmatprep.subr.mxu0 0.0
        %415 = vmatpush1.msra.mxu0 %v289
        %416 = vmatprep.subr.mxu0 0.0
        %417 = vmatpush1.msra.mxu0 %v286
        %418 = vmatprep.subr.mxu0 0.0
        %419 = vmatpush1.msra.mxu0 %v283
        %420 = vmatprep.subr.mxu0 0.0
        %421 = vmatpush1.msra.mxu0 %v280
        %422 = vmatprep.subr.mxu0 0.0
        %423 = vmatpush1.msra.mxu0 %v277
        %424 = vmatprep.subr.mxu0 0.0
        %425 = vmatpush1.msra.mxu0 %v274
        %426 = vmatprep.subr.mxu0 0.0
        %427 = vmatpush1.msra.mxu0 %v271
        %428 = vmatprep.subr.mxu0 0.0
        %429 = vmatpush1.msra.mxu0 %v268
        %430 = vmatprep.subr.mxu0 0.0
        %431 = vmatpush1.msra.mxu0 %v265
        %432 = vmatprep.subr.mxu0 0.0
        %433 = vmatpush1.msra.mxu0 %v262
        %434 = vmatprep.subr.mxu0 0.0
        %435 = vmatpush1.msra.mxu0 %v259
        %436 = vmatprep.subr.mxu0 0.0
        %437 = vmatpush1.msra.mxu0 %v256
        %438 = vmatprep.subr.mxu0 0.0
        %439 = vmatpush1.msra.mxu0 %v253
        %440 = vmatprep.subr.mxu0 0.0
        %441 = vmatpush2.msra.mxu0 0.0
        %442 = vmatprep.subr.mxu0 0.0
        %443 = vmatpush2.msra.mxu0 0.0
        %444 = vmatprep.subr.mxu0 0.0
        %445 = vmatpush2.msra.mxu0 0.0
        %446 = vmatprep.subr.mxu0 0.0
        %447 = vmatpush2.msra.mxu0 0.0
        %448 = vmatprep.subr.mxu0 0.0
        %449 = vmatpush2.msra.mxu0 0.0
        %450 = vmatprep.subr.mxu0 0.0
        %451 = vmatpush2.msra.mxu0 0.0
        %452 = vmatprep.subr.mxu0 0.0
        %453 = vmatpush2.msra.mxu0 0.0
        %454 = vmatprep.subr.mxu0 0.0
        %455 = vmatpush2.msra.mxu0 0.0
        %456 = vmatprep.subr.mxu0 0.0
        %457 = vmatpush2.msra.mxu0 0.0
        %458 = vmatprep.subr.mxu0 0.0
        %459 = vmatpush2.msra.mxu0 0.0
        %460 = vmatprep.subr.mxu0 0.0
        %461 = vmatpush2.msra.mxu0 0.0
        %462 = vmatprep.subr.mxu0 0.0
        %463 = vmatpush2.msra.mxu0 0.0
        %464 = vmatprep.subr.mxu0 0.0
        %465 = vmatpush2.msra.mxu0 0.0
        %466 = vmatprep.subr.mxu0 0.0
        %467 = vmatpush2.msra.mxu0 0.0
        %468 = vmatprep.subr.mxu0 0.0
        %469 = vmatpush2.msra.mxu0 %v323
        %470 = vmatprep.subr.mxu0 0.0
        %471 = vmatpush2.msra.mxu0 %v301
        %472 = vmatprep.mubr.f32.mxu0 %v307
        %473 = vmatmul.mubr.f32.gmra.mxu0 %v245
        %v474 = vpop.f32.mrf.mxu0
        %v475 = vadd.f32 0.0, %v474
        %v476 = vpop.f32.mrf.mxu0
        %477 = vmatprep.mubr.f32.mxu0 %v310
        %478 = vmatmul.mubr.f32.gmra.mxu0 %v247
        %v479 = vpop.f32.mrf.mxu0
        %v480 = vadd.f32 0.0, %v479
        %v481 = vpop.f32.mrf.mxu0
        %482 = vmatprep.mubr.f32.mxu0 %v313
        %483 = vmatmul.mubr.f32.gmra.mxu0 %v249
        %v484 = vpop.f32.mrf.mxu0
        %v485 = vadd.f32 0.0, %v484
        %v486 = vpop.f32.mrf.mxu0
        %487 = vdwg.mxu0
        %v488 = vld [vmem:[#allocation5] sm:$0xff]
        %v489 = vld [vmem:[#allocation5 + $0x8] sm:$0xff]
        %v490 = vld [vmem:[#allocation5 + $0x10] sm:$0xff]
        %v491 = vld [vmem:[%s3] sm:$0x7]
        %v493 = vlaneseq
        %v494 = vshrl.u32 %v493, 7
        %v495 = vsub.s32 0, %v494
        %v496 = vrot.slane %v491, %v495
        %v497 = vlaneseq
        %v498 = vshrl.u32 %v497, 7
        %v499 = vsub.s32 1, %v498
        %v500 = vrot.slane %v491, %v499
        %v501 = vlaneseq
        %v502 = vshrl.u32 %v501, 7
        %v503 = vsub.s32 2, %v502
        %v504 = vrot.slane %v491, %v503
        %vm508 = vcmask 195584
        %v510 = vsel %vm508, %v488, 0
        %v513 = vsel %vm508, %v489, 0
        %v516 = vsel %vm508, %v490, 0
        %518 = vmatprep.subr.mxu0 0.0
        %519 = vmatpush1.msra.mxu0 0.0
        %520 = vmatprep.subr.mxu0 0.0
        %521 = vmatpush1.msra.mxu0 0.0
        %522 = vmatprep.subr.mxu0 0.0
        %523 = vmatpush1.msra.mxu0 0.0
        %524 = vmatprep.subr.mxu0 0.0
        %525 = vmatpush1.msra.mxu0 0.0
        %526 = vmatprep.subr.mxu0 0.0
        %527 = vmatpush1.msra.mxu0 0.0
        %528 = vmatprep.subr.mxu0 0.0
        %529 = vmatpush1.msra.mxu0 0.0
        %530 = vmatprep.subr.mxu0 0.0
        %531 = vmatpush1.msra.mxu0 0.0
        %532 = vmatprep.subr.mxu0 0.0
        %533 = vmatpush1.msra.mxu0 0.0
        %534 = vmatprep.subr.mxu0 0.0
        %535 = vmatpush1.msra.mxu0 0.0
        %536 = vmatprep.subr.mxu0 0.0
        %537 = vmatpush1.msra.mxu0 0.0
        %538 = vmatprep.subr.mxu0 0.0
        %539 = vmatpush1.msra.mxu0 0.0
        %540 = vmatprep.subr.mxu0 0.0
        %541 = vmatpush1.msra.mxu0 0.0
        %542 = vmatprep.subr.mxu0 0.0
        %543 = vmatpush1.msra.mxu0 0.0
        %544 = vmatprep.subr.mxu0 %v406
        %545 = vmatpush1.msra.mxu0 %v404
        %546 = vmatprep.subr.mxu0 %v400
        %547 = vmatpush1.msra.mxu0 %v398
        %548 = vmatprep.subr.mxu0 %v394
        %549 = vmatpush1.msra.mxu0 %v392
        %550 = vmatprep.subr.mxu0 0.0
        %551 = vmatpush2.msra.mxu0 0.0
        %552 = vmatprep.subr.mxu0 0.0
        %553 = vmatpush2.msra.mxu0 0.0
        %554 = vmatprep.subr.mxu0 0.0
        %555 = vmatpush2.msra.mxu0 0.0
        %556 = vmatprep.subr.mxu0 0.0
        %557 = vmatpush2.msra.mxu0 0.0
        %558 = vmatprep.subr.mxu0 0.0
        %559 = vmatpush2.msra.mxu0 0.0
        %560 = vmatprep.subr.mxu0 0.0
        %561 = vmatpush2.msra.mxu0 0.0
        %562 = vmatprep.subr.mxu0 0.0
        %563 = vmatpush2.msra.mxu0 0.0
        %564 = vmatprep.subr.mxu0 0.0
        %565 = vmatpush2.msra.mxu0 0.0
        %566 = vmatprep.subr.mxu0 0.0
        %567 = vmatpush2.msra.mxu0 0.0
        %568 = vmatprep.subr.mxu0 0.0
        %569 = vmatpush2.msra.mxu0 0.0
        %570 = vmatprep.subr.mxu0 0.0
        %571 = vmatpush2.msra.mxu0 0.0
        %572 = vmatprep.subr.mxu0 0.0
        %573 = vmatpush2.msra.mxu0 0.0
        %574 = vmatprep.subr.mxu0 0.0
        %575 = vmatpush2.msra.mxu0 0.0
        %576 = vmatprep.subr.mxu0 0.0
        %577 = vmatpush2.msra.mxu0 0.0
        %578 = vmatprep.subr.mxu0 0.0
        %579 = vmatpush2.msra.mxu0 0.0
        %580 = vmatprep.subr.mxu0 0.0
        %581 = vmatpush2.msra.mxu0 0.0
        %582 = vmatprep.mubr.f32.mxu0 0.0
        %583 = vmatmul.mubr.f32.gmra.mxu0 %v510
        %v584 = vpop.f32.mrf.mxu0
        %v585 = vadd.f32 %v496, %v584
        %v586 = vpop.f32.mrf.mxu0
        %v587 = vadd.f32 %v500, %v586
        %588 = vmatprep.mubr.f32.mxu0 0.0
        %589 = vmatmul.mubr.f32.gmra.mxu0 %v513
        %v590 = vpop.f32.mrf.mxu0
        %v591 = vadd.f32 %v496, %v590
        %v592 = vpop.f32.mrf.mxu0
        %v593 = vadd.f32 %v500, %v592
        %594 = vmatprep.mubr.f32.mxu0 0.0
        %595 = vmatmul.mubr.f32.gmra.mxu0 %v516
        %v596 = vpop.f32.mrf.mxu0
        %v597 = vadd.f32 %v496, %v596
        %v598 = vpop.f32.mrf.mxu0
        %v599 = vadd.f32 %v500, %v598
        %600 = vdwg.mxu0
        %601 = vmatprep.subr.mxu0 0.0
        %602 = vmatpush1.msra.mxu0 0.0
        %603 = vmatprep.subr.mxu0 0.0
        %604 = vmatpush1.msra.mxu0 0.0
        %605 = vmatprep.subr.mxu0 0.0
        %606 = vmatpush1.msra.mxu0 0.0
        %607 = vmatprep.subr.mxu0 0.0
        %608 = vmatpush1.msra.mxu0 0.0
        %609 = vmatprep.subr.mxu0 0.0
        %610 = vmatpush1.msra.mxu0 0.0
        %611 = vmatprep.subr.mxu0 0.0
        %612 = vmatpush1.msra.mxu0 0.0
        %613 = vmatprep.subr.mxu0 0.0
        %614 = vmatpush1.msra.mxu0 0.0
        %615 = vmatprep.subr.mxu0 0.0
        %616 = vmatpush1.msra.mxu0 0.0
        %617 = vmatprep.subr.mxu0 0.0
        %618 = vmatpush1.msra.mxu0 0.0
        %619 = vmatprep.subr.mxu0 0.0
        %620 = vmatpush1.msra.mxu0 0.0
        %621 = vmatprep.subr.mxu0 0.0
        %622 = vmatpush1.msra.mxu0 0.0
        %623 = vmatprep.subr.mxu0 0.0
        %624 = vmatpush1.msra.mxu0 0.0
        %625 = vmatprep.subr.mxu0 0.0
        %626 = vmatpush1.msra.mxu0 0.0
        %627 = vmatprep.subr.mxu0 0.0
        %628 = vmatpush1.msra.mxu0 %v485
        %629 = vmatprep.subr.mxu0 0.0
        %630 = vmatpush1.msra.mxu0 %v480
        %631 = vmatprep.subr.mxu0 0.0
        %632 = vmatpush1.msra.mxu0 %v475
        %633 = vmatprep.subr.mxu0 0.0
        %634 = vmatpush2.msra.mxu0 0.0
        %635 = vmatprep.subr.mxu0 0.0
        %636 = vmatpush2.msra.mxu0 0.0
        %637 = vmatprep.subr.mxu0 0.0
        %638 = vmatpush2.msra.mxu0 0.0
        %639 = vmatprep.subr.mxu0 0.0
        %640 = vmatpush2.msra.mxu0 0.0
        %641 = vmatprep.subr.mxu0 0.0
        %642 = vmatpush2.msra.mxu0 0.0
        %643 = vmatprep.subr.mxu0 0.0
        %644 = vmatpush2.msra.mxu0 0.0
        %645 = vmatprep.subr.mxu0 0.0
        %646 = vmatpush2.msra.mxu0 0.0
        %647 = vmatprep.subr.mxu0 0.0
        %648 = vmatpush2.msra.mxu0 0.0
        %649 = vmatprep.subr.mxu0 0.0
        %650 = vmatpush2.msra.mxu0 0.0
        %651 = vmatprep.subr.mxu0 0.0
        %652 = vmatpush2.msra.mxu0 0.0
        %653 = vmatprep.subr.mxu0 0.0
        %654 = vmatpush2.msra.mxu0 0.0
        %655 = vmatprep.subr.mxu0 0.0
        %656 = vmatpush2.msra.mxu0 0.0
        %657 = vmatprep.subr.mxu0 0.0
        %658 = vmatpush2.msra.mxu0 0.0
        %659 = vmatprep.subr.mxu0 0.0
        %660 = vmatpush2.msra.mxu0 0.0
        %661 = vmatprep.subr.mxu0 0.0
        %662 = vmatpush2.msra.mxu0 0.0
        %663 = vmatprep.subr.mxu0 0.0
        %664 = vmatpush2.msra.mxu0 0.0
        %665 = vmatprep.mubr.f32.mxu0 0.0
        %666 = vmatmul.mubr.f32.gmra.mxu0 %v510
        %v667 = vpop.f32.mrf.mxu0
        %v668 = vadd.f32 %v504, %v667
        %v669 = vpop.f32.mrf.mxu0
        %670 = vmatprep.mubr.f32.mxu0 0.0
        %671 = vmatmul.mubr.f32.gmra.mxu0 %v513
        %v672 = vpop.f32.mrf.mxu0
        %v673 = vadd.f32 %v504, %v672
        %v674 = vpop.f32.mrf.mxu0
        %675 = vmatprep.mubr.f32.mxu0 0.0
        %676 = vmatmul.mubr.f32.gmra.mxu0 %v516
        %v677 = vpop.f32.mrf.mxu0
        %v678 = vadd.f32 %v504, %v677
        %v679 = vpop.f32.mrf.mxu0
        %680 = vdwg.mxu0
        %681 = vst [vmem:[%s244] sm:$0xff] %v585
        %682 = vst [vmem:[%s244 + $0x8] sm:$0xff] %v587
        %683 = vst.msk [vmem:[%s244 + $0x10] sm:$0xff] %vm508, %v668
        %684 = vst [vmem:[%s244 + $0x18] sm:$0xff] %v591
        %685 = vst [vmem:[%s244 + $0x20] sm:$0xff] %v593
        %686 = vst.msk [vmem:[%s244 + $0x28] sm:$0xff] %vm508, %v673
        %687 = vst [vmem:[%s244 + $0x30] sm:$0xff] %v597
        %688 = vst [vmem:[%s244 + $0x38] sm:$0xff] %v599
        %689 = vst.msk [vmem:[%s244 + $0x40] sm:$0xff] %vm508, %v678
        %s690 = sand.u32 %s119, 1
        %s691 = scalar_lea.sflag [#allocation4], %s690
        %s692 = sand.u32 %s119, 1
        %s693 = smul.addr %s692, 72
        %s694 = scalar_lea.vmem [#allocation8], %s693
        // Predicated region
        $region49: #{tpu_custom_call.1} parent=35 // pred_check
          %p695 = pneg %p129
        $region50: #{tpu_custom_call.1} parent=35 // pred_check_branch
          %697 = sbr.rel (%p695) target = $region52
        $region51: #{tpu_custom_call.1} parent=35 // pred_region
          %s699 = ssub.s32 1152, 1152
          %700 = vsyncadd %s691, %s699
          %s701 = smul.addr %s22, 9
          %s702 = smul.addr %s701, 128
          %s703 = scalar_lea.hbm %s4, %s702
          %s704 = sshll.u32 %s694, 4
          %s705 = int_to_ptr.vmem [resolvable:$true] %s704
          %710 = dma.vmem_to_hbm [thread:$0]  %s705, 1152, %s703, %s691, 384, 384, 24
        $region52: #{tpu_custom_call.1} parent=35 // pred_fallthru
          _
      $region36: #{tpu_custom_call.1} parent=5 // pred_fallthru
        _
      %p711 = scmp.le.s32.totalorder 2, %s17
      // Predicated region
      $region53: #{tpu_custom_call.1} parent=5 // pred_check
        %p712 = pneg %p711
      $region54: #{tpu_custom_call.1} parent=5 // pred_check_branch
        %714 = sbr.rel (%p712) target = $region56
      $region55: #{tpu_custom_call.1} parent=5 // pred_region
        %s715 = ssub.s32 %s17, 2
        // Predicated region
        $region57: #{tpu_custom_call.1} parent=55 // pred_check
          %p716 = pneg %p135
        $region58: #{tpu_custom_call.1} parent=55 // pred_check_branch
          %718 = sbr.rel (%p716) target = $region60
        $region59: #{tpu_custom_call.1} parent=55 // pred_region
          %s719 = sand.u32 %s120, 1
          %s720 = scalar_lea.sflag [#allocation4], %s719
          %s721 = sand.u32 %s120, 1
          %s722 = smul.addr %s721, 72
          %s723 = scalar_lea.vmem [#allocation8], %s722
          %724 = dma.done %s720, 1152
        $region60: #{tpu_custom_call.1} parent=55 // pred_fallthru
          _
      $region56: #{tpu_custom_call.1} parent=5 // pred_fallthru
        _
    $region6: #{tpu_custom_call.1} parent=1 // loop_footer
      %s21 = sadd.s32 1, %s17
    $region7: #{tpu_custom_call.1} parent=1 // loop_footer_branch
      %16 = sbr.rel target = $region3
    $region8: #{tpu_custom_call.1} parent=1 // loop_exit
      _
    %725 = vsyncpa [#allocation3], 1
    %s726 = scalar_lea.sflag [#allocation3], 1
    %727 = vsyncpa %s726, 1
    %728 = vsyncpa [#allocation6], 1
    %729 = vsyncpa [#allocation4], 1
    %s730 = scalar_lea.sflag [#allocation4], 1
    %731 = vsyncpa %s730, 1

</llo_original>
